<compile_context>
chip_gen: v6e
topology: v6e:2x2x1
jax: 0.10.0
libtpu: 0.0.40
codegen_flags: <defaults>
</compile_context>

<pallas_src>
import functools

import jax
import jax.numpy as jnp
from jax.experimental import pallas as pl
from jax.experimental.pallas import tpu as pltpu


def _round_up(x, m):
    return (x + m - 1) // m * m


# ----------------------------------------------------------------------------
# Fused kernel: MLP -> (hoisted) input projection -> LSTM recurrence -> Linear
# ----------------------------------------------------------------------------
def _fused_lstm_net_kernel(x_ref, h0_ref, c0_ref, w1_ref, b1_ref,
                           w_ih_ref, w_hh_ref, b_lstm_ref,
                           w_out_ref, b_out_ref,
                           logits_ref, hn_ref, cn_ref,
                           emb_scr, *, n_seq, T, H):
    # x_ref is time-major: row index = t * n_seq + s, shape (T*n_seq, num_inp)

    # ---- MLP: tanh(x @ W1 + b1) on all T*n_seq rows at once ----------------
    mlp = jnp.tanh(
        jnp.dot(x_ref[...], w1_ref[...], preferred_element_type=jnp.float32)
        + b1_ref[...])

    # ---- Hoisted LSTM input projection for every timestep ------------------
    # One (T*n_seq, F1) @ (F1, 4H) GEMM instead of T tiny ones in the loop.
    xproj = (jnp.dot(mlp, w_ih_ref[...], preferred_element_type=jnp.float32)
             + b_lstm_ref[...])                          # (T*n_seq, 4H)

    # ---- Recurrence (T small & static -> unrolled; only the (B,H)@(H,4H)
    #      recurrent matmul plus gate math remain in the serial loop) --------
    h = h0_ref[...]                                       # (n_seq, H)
    c = c0_ref[...]
    w_hh = w_hh_ref[...]                                  # hoisted load
    for t in range(T):
        gates = xproj[t * n_seq:(t + 1) * n_seq, :] + jnp.dot(
            h, w_hh, preferred_element_type=jnp.float32)  # (n_seq, 4H)
        # Full-width transcendentals (EUP), then static lane slices.
        sg = jax.nn.sigmoid(gates)
        tg = jnp.tanh(gates)
        i_g = sg[:, 0 * H:1 * H]          # PyTorch gate order: i, f, g, o
        f_g = sg[:, 1 * H:2 * H]
        g_g = tg[:, 2 * H:3 * H]
        o_g = sg[:, 3 * H:4 * H]
        c = f_g * c + i_g * g_g
        h = o_g * jnp.tanh(c)
        emb_scr[t * n_seq:(t + 1) * n_seq, :] = h         # time-major emb rows

    hn_ref[...] = h                                       # written once
    cn_ref[...] = c

    # ---- Output Linear on all rows at once (lane-padded to 128) ------------
    logits_ref[...] = (
        jnp.dot(emb_scr[...], w_out_ref[...], preferred_element_type=jnp.float32)
        + b_out_ref[...])


def _fused_forward_call(x_tm, h0, c0, w1, b1, w_ih_t, w_hh_t, b_lstm,
                        w_out, b_out, *, n_seq, T, H):
    rows = x_tm.shape[0]
    n_out_p = w_out.shape[-1]
    kernel = functools.partial(_fused_lstm_net_kernel, n_seq=n_seq, T=T, H=H)
    full = lambda i: (0, 0)
    spec = lambda a: pl.BlockSpec(a.shape, full)
    return pl.pallas_call(
        kernel,
        out_shape=(
            jax.ShapeDtypeStruct((rows, n_out_p), jnp.float32),  # logits (tm)
            jax.ShapeDtypeStruct((n_seq, H), jnp.float32),       # h_n
            jax.ShapeDtypeStruct((n_seq, H), jnp.float32),       # c_n
        ),
        grid=(1,),
        in_specs=[spec(a) for a in (x_tm, h0, c0, w1, b1, w_ih_t, w_hh_t,
                                    b_lstm, w_out, b_out)],
        out_specs=(
            pl.BlockSpec((rows, n_out_p), full),
            pl.BlockSpec((n_seq, H), full),
            pl.BlockSpec((n_seq, H), full),
        ),
        scratch_shapes=[pltpu.VMEM((rows, H), jnp.float32)],      # emb
        compiler_params=pltpu.CompilerParams(
            dimension_semantics=("arbitrary",)),
    )(x_tm, h0, c0, w1, b1, w_ih_t, w_hh_t, b_lstm, w_out, b_out)


# ----------------------------------------------------------------------------
# LSTMNet forward (padding / layout plumbing in the wrapper, one Pallas call)
# ----------------------------------------------------------------------------
def lstm_net_forward(params, x, state, seq_lens, time_major=False):
    """Mirror of LSTMNet.forward (hiddens has len 2, dropout_pct == 0)."""
    del seq_lens, time_major
    # TODO(synk): seq_lens-based masking of padded timesteps and training-mode
    # nn.Dropout are not implemented (dropout_pct == 0, eval semantics).
    h0, c0 = state                                   # each (num_seqs, H)
    num_seqs, H = h0.shape
    batch_size, num_inp = x.shape
    T = batch_size // num_seqs
    num_out = params["w_out"].shape[-1]

    # Pad the per-step row dim (sublanes) to a multiple of 8 and the output
    # Linear columns (lanes) to a multiple of 128.
    n_seq_p = max(_round_up(num_seqs, 8), 8)
    n_out_p = max(_round_up(num_out, 128), 128)

    # add_time_dimension (batch-major) + time-major layout for the kernel.
    x_b = x.reshape(num_seqs, T, num_inp)
    x_b = jnp.pad(x_b, ((0, n_seq_p - num_seqs), (0, 0), (0, 0)))
    x_tm = jnp.transpose(x_b, (1, 0, 2)).reshape(T * n_seq_p, num_inp)

    h0_p = jnp.pad(h0, ((0, n_seq_p - num_seqs), (0, 0)))
    c0_p = jnp.pad(c0, ((0, n_seq_p - num_seqs), (0, 0)))
    w_out_p = jnp.pad(params["w_out"], ((0, 0), (0, n_out_p - num_out)))
    b_out_p = jnp.pad(params["b_out"], ((0, 0), (0, n_out_p - num_out)))

    logits_tm, h_n_p, c_n_p = _fused_forward_call(
        x_tm, h0_p, c0_p, params["w1"], params["b1"],
        params["w_ih_t"], params["w_hh_t"], params["b_lstm"],
        w_out_p, b_out_p, n_seq=n_seq_p, T=T, H=H)

    # Back to batch-major order (emb.view(batch_size, -1)) and strip padding.
    logits = jnp.transpose(
        logits_tm.reshape(T, n_seq_p, n_out_p),
        (1, 0, 2))[:num_seqs, :, :num_out].reshape(batch_size, num_out)
    return logits, [h_n_p[:num_seqs], c_n_p[:num_seqs]]


# ----------------------------------------------------------------------------
# Pure-JAX reference (correctness check only)
# ----------------------------------------------------------------------------
def _ref_forward(params, x, state, num_seqs):
    h0, c0 = state
    batch_size = x.shape[0]
    T = batch_size // num_seqs
    emb = jnp.tanh(x @ params["w1"] + params["b1"][0])
    x_tbf = jnp.transpose(emb.reshape(num_seqs, T, -1), (1, 0, 2))

    def step(carry, x_t):
        h, c = carry
        gates = x_t @ params["w_ih_t"] + h @ params["w_hh_t"] + params["b_lstm"][0]
        i, f, g, o = jnp.split(gates, 4, axis=-1)
        c = jax.nn.sigmoid(f) * c + jax.nn.sigmoid(i) * jnp.tanh(g)
        h = jax.nn.sigmoid(o) * jnp.tanh(c)
        return (h, c), h

    (h_n, c_n), out = jax.lax.scan(step, (h0, c0), x_tbf)
    emb2 = jnp.transpose(out, (1, 0, 2)).reshape(batch_size, -1)
    logits = emb2 @ params["w_out"] + params["b_out"][0]
    return logits, [h_n, c_n]


# ----------------------------------------------------------------------------
if __name__ == "__main__":
    # Model config (hiddens has length 2 -> MLP + LSTM branch of __init__)
    num_inp, hiddens, num_out = 16, [32, 32], 8
    H = hiddens[-1]

    num_seqs, T = 2, 4
    batch_size = num_seqs * T

    key = jax.random.PRNGKey(0)
    ks = jax.random.split(key, 8)
    u = lambda k, shape, s=0.1: jax.random.uniform(
        k, shape, jnp.float32, minval=-s, maxval=s)

    params = {
        # mlp: Linear(num_inp, hiddens[0]) stored transposed (in, out)
        "w1": u(ks[0], (num_inp, hiddens[0])),
        "b1": u(ks[1], (1, hiddens[0])),
        # lstm: weight_ih_l0 (4H, in), weight_hh_l0 (4H, H) stored transposed
        "w_ih_t": u(ks[2], (hiddens[0], 4 * H)),
        "w_hh_t": u(ks[3], (H, 4 * H)),
        # combined b_ih_l0 + b_hh_l0
        "b_lstm": u(ks[4], (1, 4 * H)),
        # final Linear(hiddens[-1], num_out) stored transposed
        "w_out": u(ks[5], (H, num_out)),
        "b_out": u(ks[6], (1, num_out)),
    }

    x = jax.random.normal(ks[7], (batch_size, num_inp), jnp.float32)
    # get_initial_state(): zeros
    state = [jnp.zeros((num_seqs, H), jnp.float32),
             jnp.zeros((num_seqs, H), jnp.float32)]
    seq_lens = jnp.full((num_seqs,), T, dtype=jnp.int32)

    fwd = jax.jit(lstm_net_forward)
    logits, state_out = fwd(params, x, state, seq_lens)
    jax.block_until_ready((logits, state_out))

    ref_logits, ref_state = _ref_forward(params, x, state, num_seqs)
    assert logits.shape == (batch_size, num_out)
    assert state_out[0].shape == (num_seqs, H)
    assert state_out[1].shape == (num_seqs, H)
    assert jnp.allclose(logits, ref_logits, atol=1e-5)
    assert jnp.allclose(state_out[0], ref_state[0], atol=1e-5)
    assert jnp.allclose(state_out[1], ref_state[1], atol=1e-5)

    print("KERNEL_OK")
</pallas_src>

<mosaic_0001>
module attributes {stable_mosaic.version = 11 : i64} {
  func.func @_fused_lstm_net_kernel(%arg0: i32, %arg1: memref<32x16xf32, #tpu.memory_space<vmem>>, %arg2: memref<8x32xf32, #tpu.memory_space<vmem>>, %arg3: memref<8x32xf32, #tpu.memory_space<vmem>>, %arg4: memref<16x32xf32, #tpu.memory_space<vmem>>, %arg5: memref<1x32xf32, #tpu.memory_space<vmem>>, %arg6: memref<32x128xf32, #tpu.memory_space<vmem>>, %arg7: memref<32x128xf32, #tpu.memory_space<vmem>>, %arg8: memref<1x128xf32, #tpu.memory_space<vmem>>, %arg9: memref<32x128xf32, #tpu.memory_space<vmem>>, %arg10: memref<1x128xf32, #tpu.memory_space<vmem>>, %arg11: memref<32x128xf32, #tpu.memory_space<vmem>>, %arg12: memref<8x32xf32, #tpu.memory_space<vmem>>, %arg13: memref<8x32xf32, #tpu.memory_space<vmem>>, %arg14: memref<32x32xf32, #tpu.memory_space<vmem>>) attributes {dimension_semantics = [#tpu.dimension_semantics<arbitrary>], iteration_bounds = array<i64: 1>, scalar_prefetch = 0 : i64, scratch_operands = 1 : i64, tpu.core_type = #tpu.core_type<tc>, window_params = [{pipeline_mode = #tpu.pipeline_mode<synchronous>, transform_indices = @transform_0, window_bounds = array<i64: 32, 16>}, {pipeline_mode = #tpu.pipeline_mode<synchronous>, transform_indices = @transform_1, window_bounds = array<i64: 8, 32>}, {pipeline_mode = #tpu.pipeline_mode<synchronous>, transform_indices = @transform_2, window_bounds = array<i64: 8, 32>}, {pipeline_mode = #tpu.pipeline_mode<synchronous>, transform_indices = @transform_3, window_bounds = array<i64: 16, 32>}, {pipeline_mode = #tpu.pipeline_mode<synchronous>, transform_indices = @transform_4, window_bounds = array<i64: 1, 32>}, {pipeline_mode = #tpu.pipeline_mode<synchronous>, transform_indices = @transform_5, window_bounds = array<i64: 32, 128>}, {pipeline_mode = #tpu.pipeline_mode<synchronous>, transform_indices = @transform_6, window_bounds = array<i64: 32, 128>}, {pipeline_mode = #tpu.pipeline_mode<synchronous>, transform_indices = @transform_7, window_bounds = array<i64: 1, 128>}, {pipeline_mode = #tpu.pipeline_mode<synchronous>, transform_indices = @transform_8, window_bounds = array<i64: 32, 128>}, {pipeline_mode = #tpu.pipeline_mode<synchronous>, transform_indices = @transform_9, window_bounds = array<i64: 1, 128>}, {pipeline_mode = #tpu.pipeline_mode<synchronous>, transform_indices = @transform_10, window_bounds = array<i64: 32, 128>}, {pipeline_mode = #tpu.pipeline_mode<synchronous>, transform_indices = @transform_11, window_bounds = array<i64: 8, 32>}, {pipeline_mode = #tpu.pipeline_mode<synchronous>, transform_indices = @transform_12, window_bounds = array<i64: 8, 32>}]} {
    %c0 = arith.constant 0 : index
    %c0_0 = arith.constant 0 : index
    %0 = vector.load %arg1[%c0, %c0_0] : memref<32x16xf32, #tpu.memory_space<vmem>>, vector<32x16xf32>
    %c0_1 = arith.constant 0 : index
    %c0_2 = arith.constant 0 : index
    %1 = vector.load %arg4[%c0_1, %c0_2] : memref<16x32xf32, #tpu.memory_space<vmem>>, vector<16x32xf32>
    %cst = arith.constant dense<0.000000e+00> : vector<32x32xf32>
    %2 = tpu.matmul %0, %1, %cst {dimension_numbers = #tpu.dot_dimension_numbers<[1], [0], [0], [1], [0, 0, 1, 1], [], []>} : vector<32x16xf32>, vector<16x32xf32>, vector<32x32xf32> -> vector<32x32xf32>
    %c0_3 = arith.constant 0 : index
    %c0_4 = arith.constant 0 : index
    %3 = vector.load %arg5[%c0_3, %c0_4] : memref<1x32xf32, #tpu.memory_space<vmem>>, vector<1x32xf32>
    %4 = vector.broadcast %3 : vector<1x32xf32> to vector<32x32xf32>
    %5 = arith.addf %2, %4 : vector<32x32xf32>
    %6 = math.tanh %5 : vector<32x32xf32>
    %c0_5 = arith.constant 0 : index
    %c0_6 = arith.constant 0 : index
    %7 = vector.load %arg6[%c0_5, %c0_6] : memref<32x128xf32, #tpu.memory_space<vmem>>, vector<32x128xf32>
    %cst_7 = arith.constant dense<0.000000e+00> : vector<32x128xf32>
    %8 = tpu.matmul %6, %7, %cst_7 {dimension_numbers = #tpu.dot_dimension_numbers<[1], [0], [0], [1], [0, 0, 1, 1], [], []>} : vector<32x32xf32>, vector<32x128xf32>, vector<32x128xf32> -> vector<32x128xf32>
    %c0_8 = arith.constant 0 : index
    %c0_9 = arith.constant 0 : index
    %9 = vector.load %arg8[%c0_8, %c0_9] : memref<1x128xf32, #tpu.memory_space<vmem>>, vector<1x128xf32>
    %10 = vector.broadcast %9 : vector<1x128xf32> to vector<32x128xf32>
    %11 = arith.addf %8, %10 : vector<32x128xf32>
    %c0_10 = arith.constant 0 : index
    %c0_11 = arith.constant 0 : index
    %12 = vector.load %arg2[%c0_10, %c0_11] : memref<8x32xf32, #tpu.memory_space<vmem>>, vector<8x32xf32>
    %c0_12 = arith.constant 0 : index
    %c0_13 = arith.constant 0 : index
    %13 = vector.load %arg3[%c0_12, %c0_13] : memref<8x32xf32, #tpu.memory_space<vmem>>, vector<8x32xf32>
    %c0_14 = arith.constant 0 : index
    %c0_15 = arith.constant 0 : index
    %14 = vector.load %arg7[%c0_14, %c0_15] : memref<32x128xf32, #tpu.memory_space<vmem>>, vector<32x128xf32>
    %15 = vector.extract_strided_slice %11 {offsets = [0, 0], sizes = [8, 128], strides = [1, 1]} : vector<32x128xf32> to vector<8x128xf32>
    %cst_16 = arith.constant dense<0.000000e+00> : vector<8x128xf32>
    %16 = tpu.matmul %12, %14, %cst_16 {dimension_numbers = #tpu.dot_dimension_numbers<[1], [0], [0], [1], [0, 0, 1, 1], [], []>} : vector<8x32xf32>, vector<32x128xf32>, vector<8x128xf32> -> vector<8x128xf32>
    %17 = arith.addf %15, %16 : vector<8x128xf32>
    %18 = arith.negf %17 : vector<8x128xf32>
    %19 = math.exp %18 : vector<8x128xf32>
    %cst_17 = arith.constant 1.000000e+00 : f32
    %20 = vector.broadcast %cst_17 : f32 to vector<8x128xf32>
    %21 = arith.addf %20, %19 : vector<8x128xf32>
    %22 = arith.divf %20, %21 : vector<8x128xf32>
    %23 = math.tanh %17 : vector<8x128xf32>
    %24 = vector.extract_strided_slice %22 {offsets = [0, 0], sizes = [8, 32], strides = [1, 1]} : vector<8x128xf32> to vector<8x32xf32>
    %25 = vector.extract_strided_slice %22 {offsets = [0, 32], sizes = [8, 32], strides = [1, 1]} : vector<8x128xf32> to vector<8x32xf32>
    %26 = vector.extract_strided_slice %23 {offsets = [0, 64], sizes = [8, 32], strides = [1, 1]} : vector<8x128xf32> to vector<8x32xf32>
    %27 = vector.extract_strided_slice %22 {offsets = [0, 96], sizes = [8, 32], strides = [1, 1]} : vector<8x128xf32> to vector<8x32xf32>
    %28 = arith.mulf %25, %13 : vector<8x32xf32>
    %29 = arith.mulf %24, %26 : vector<8x32xf32>
    %30 = arith.addf %28, %29 : vector<8x32xf32>
    %31 = math.tanh %30 : vector<8x32xf32>
    %32 = arith.mulf %27, %31 : vector<8x32xf32>
    %c0_18 = arith.constant 0 : index
    %c0_19 = arith.constant 0 : index
    %33 = vector.load %arg14[%c0_18, %c0_19] : memref<32x32xf32, #tpu.memory_space<vmem>>, vector<8x32xf32>
    tpu.vector_store %arg14[%c0_18, %c0_19], %32 {strides = array<i32>} : memref<32x32xf32, #tpu.memory_space<vmem>>, vector<8x32xf32>,
    %34 = vector.extract_strided_slice %11 {offsets = [8, 0], sizes = [8, 128], strides = [1, 1]} : vector<32x128xf32> to vector<8x128xf32>
    %cst_20 = arith.constant dense<0.000000e+00> : vector<8x128xf32>
    %35 = tpu.matmul %32, %14, %cst_20 {dimension_numbers = #tpu.dot_dimension_numbers<[1], [0], [0], [1], [0, 0, 1, 1], [], []>} : vector<8x32xf32>, vector<32x128xf32>, vector<8x128xf32> -> vector<8x128xf32>
    %36 = arith.addf %34, %35 : vector<8x128xf32>
    %37 = arith.negf %36 : vector<8x128xf32>
    %38 = math.exp %37 : vector<8x128xf32>
    %cst_21 = arith.constant 1.000000e+00 : f32
    %39 = vector.broadcast %cst_21 : f32 to vector<8x128xf32>
    %40 = arith.addf %39, %38 : vector<8x128xf32>
    %41 = arith.divf %39, %40 : vector<8x128xf32>
    %42 = math.tanh %36 : vector<8x128xf32>
    %43 = vector.extract_strided_slice %41 {offsets = [0, 0], sizes = [8, 32], strides = [1, 1]} : vector<8x128xf32> to vector<8x32xf32>
    %44 = vector.extract_strided_slice %41 {offsets = [0, 32], sizes = [8, 32], strides = [1, 1]} : vector<8x128xf32> to vector<8x32xf32>
    %45 = vector.extract_strided_slice %42 {offsets = [0, 64], sizes = [8, 32], strides = [1, 1]} : vector<8x128xf32> to vector<8x32xf32>
    %46 = vector.extract_strided_slice %41 {offsets = [0, 96], sizes = [8, 32], strides = [1, 1]} : vector<8x128xf32> to vector<8x32xf32>
    %47 = arith.mulf %44, %30 : vector<8x32xf32>
    %48 = arith.mulf %43, %45 : vector<8x32xf32>
    %49 = arith.addf %47, %48 : vector<8x32xf32>
    %50 = math.tanh %49 : vector<8x32xf32>
    %51 = arith.mulf %46, %50 : vector<8x32xf32>
    %c8 = arith.constant 8 : index
    %c0_22 = arith.constant 0 : index
    %52 = vector.load %arg14[%c8, %c0_22] : memref<32x32xf32, #tpu.memory_space<vmem>>, vector<8x32xf32>
    tpu.vector_store %arg14[%c8, %c0_22], %51 {strides = array<i32>} : memref<32x32xf32, #tpu.memory_space<vmem>>, vector<8x32xf32>,
    %53 = vector.extract_strided_slice %11 {offsets = [16, 0], sizes = [8, 128], strides = [1, 1]} : vector<32x128xf32> to vector<8x128xf32>
    %cst_23 = arith.constant dense<0.000000e+00> : vector<8x128xf32>
    %54 = tpu.matmul %51, %14, %cst_23 {dimension_numbers = #tpu.dot_dimension_numbers<[1], [0], [0], [1], [0, 0, 1, 1], [], []>} : vector<8x32xf32>, vector<32x128xf32>, vector<8x128xf32> -> vector<8x128xf32>
    %55 = arith.addf %53, %54 : vector<8x128xf32>
    %56 = arith.negf %55 : vector<8x128xf32>
    %57 = math.exp %56 : vector<8x128xf32>
    %cst_24 = arith.constant 1.000000e+00 : f32
    %58 = vector.broadcast %cst_24 : f32 to vector<8x128xf32>
    %59 = arith.addf %58, %57 : vector<8x128xf32>
    %60 = arith.divf %58, %59 : vector<8x128xf32>
    %61 = math.tanh %55 : vector<8x128xf32>
    %62 = vector.extract_strided_slice %60 {offsets = [0, 0], sizes = [8, 32], strides = [1, 1]} : vector<8x128xf32> to vector<8x32xf32>
    %63 = vector.extract_strided_slice %60 {offsets = [0, 32], sizes = [8, 32], strides = [1, 1]} : vector<8x128xf32> to vector<8x32xf32>
    %64 = vector.extract_strided_slice %61 {offsets = [0, 64], sizes = [8, 32], strides = [1, 1]} : vector<8x128xf32> to vector<8x32xf32>
    %65 = vector.extract_strided_slice %60 {offsets = [0, 96], sizes = [8, 32], strides = [1, 1]} : vector<8x128xf32> to vector<8x32xf32>
    %66 = arith.mulf %63, %49 : vector<8x32xf32>
    %67 = arith.mulf %62, %64 : vector<8x32xf32>
    %68 = arith.addf %66, %67 : vector<8x32xf32>
    %69 = math.tanh %68 : vector<8x32xf32>
    %70 = arith.mulf %65, %69 : vector<8x32xf32>
    %c16 = arith.constant 16 : index
    %c0_25 = arith.constant 0 : index
    %71 = vector.load %arg14[%c16, %c0_25] : memref<32x32xf32, #tpu.memory_space<vmem>>, vector<8x32xf32>
    tpu.vector_store %arg14[%c16, %c0_25], %70 {strides = array<i32>} : memref<32x32xf32, #tpu.memory_space<vmem>>, vector<8x32xf32>,
    %72 = vector.extract_strided_slice %11 {offsets = [24, 0], sizes = [8, 128], strides = [1, 1]} : vector<32x128xf32> to vector<8x128xf32>
    %cst_26 = arith.constant dense<0.000000e+00> : vector<8x128xf32>
    %73 = tpu.matmul %70, %14, %cst_26 {dimension_numbers = #tpu.dot_dimension_numbers<[1], [0], [0], [1], [0, 0, 1, 1], [], []>} : vector<8x32xf32>, vector<32x128xf32>, vector<8x128xf32> -> vector<8x128xf32>
    %74 = arith.addf %72, %73 : vector<8x128xf32>
    %75 = arith.negf %74 : vector<8x128xf32>
    %76 = math.exp %75 : vector<8x128xf32>
    %cst_27 = arith.constant 1.000000e+00 : f32
    %77 = vector.broadcast %cst_27 : f32 to vector<8x128xf32>
    %78 = arith.addf %77, %76 : vector<8x128xf32>
    %79 = arith.divf %77, %78 : vector<8x128xf32>
    %80 = math.tanh %74 : vector<8x128xf32>
    %81 = vector.extract_strided_slice %79 {offsets = [0, 0], sizes = [8, 32], strides = [1, 1]} : vector<8x128xf32> to vector<8x32xf32>
    %82 = vector.extract_strided_slice %79 {offsets = [0, 32], sizes = [8, 32], strides = [1, 1]} : vector<8x128xf32> to vector<8x32xf32>
    %83 = vector.extract_strided_slice %80 {offsets = [0, 64], sizes = [8, 32], strides = [1, 1]} : vector<8x128xf32> to vector<8x32xf32>
    %84 = vector.extract_strided_slice %79 {offsets = [0, 96], sizes = [8, 32], strides = [1, 1]} : vector<8x128xf32> to vector<8x32xf32>
    %85 = arith.mulf %82, %68 : vector<8x32xf32>
    %86 = arith.mulf %81, %83 : vector<8x32xf32>
    %87 = arith.addf %85, %86 : vector<8x32xf32>
    %88 = math.tanh %87 : vector<8x32xf32>
    %89 = arith.mulf %84, %88 : vector<8x32xf32>
    %c24 = arith.constant 24 : index
    %c0_28 = arith.constant 0 : index
    %90 = vector.load %arg14[%c24, %c0_28] : memref<32x32xf32, #tpu.memory_space<vmem>>, vector<8x32xf32>
    tpu.vector_store %arg14[%c24, %c0_28], %89 {strides = array<i32>} : memref<32x32xf32, #tpu.memory_space<vmem>>, vector<8x32xf32>,
    %c0_29 = arith.constant 0 : index
    %c0_30 = arith.constant 0 : index
    %91 = vector.load %arg12[%c0_29, %c0_30] : memref<8x32xf32, #tpu.memory_space<vmem>>, vector<8x32xf32>
    tpu.vector_store %arg12[%c0_29, %c0_30], %89 {strides = array<i32>} : memref<8x32xf32, #tpu.memory_space<vmem>>, vector<8x32xf32>,
    %c0_31 = arith.constant 0 : index
    %c0_32 = arith.constant 0 : index
    %92 = vector.load %arg13[%c0_31, %c0_32] : memref<8x32xf32, #tpu.memory_space<vmem>>, vector<8x32xf32>
    tpu.vector_store %arg13[%c0_31, %c0_32], %87 {strides = array<i32>} : memref<8x32xf32, #tpu.memory_space<vmem>>, vector<8x32xf32>,
    %c0_33 = arith.constant 0 : index
    %c0_34 = arith.constant 0 : index
    %93 = vector.load %arg14[%c0_33, %c0_34] : memref<32x32xf32, #tpu.memory_space<vmem>>, vector<32x32xf32>
    %c0_35 = arith.constant 0 : index
    %c0_36 = arith.constant 0 : index
    %94 = vector.load %arg9[%c0_35, %c0_36] : memref<32x128xf32, #tpu.memory_space<vmem>>, vector<32x128xf32>
    %cst_37 = arith.constant dense<0.000000e+00> : vector<32x128xf32>
    %95 = tpu.matmul %93, %94, %cst_37 {dimension_numbers = #tpu.dot_dimension_numbers<[1], [0], [0], [1], [0, 0, 1, 1], [], []>} : vector<32x32xf32>, vector<32x128xf32>, vector<32x128xf32> -> vector<32x128xf32>
    %c0_38 = arith.constant 0 : index
    %c0_39 = arith.constant 0 : index
    %96 = vector.load %arg10[%c0_38, %c0_39] : memref<1x128xf32, #tpu.memory_space<vmem>>, vector<1x128xf32>
    %97 = vector.broadcast %96 : vector<1x128xf32> to vector<32x128xf32>
    %98 = arith.addf %95, %97 : vector<32x128xf32>
    %c0_40 = arith.constant 0 : index
    %c0_41 = arith.constant 0 : index
    %99 = vector.load %arg11[%c0_40, %c0_41] : memref<32x128xf32, #tpu.memory_space<vmem>>, vector<32x128xf32>
    tpu.vector_store %arg11[%c0_40, %c0_41], %98 {strides = array<i32>} : memref<32x128xf32, #tpu.memory_space<vmem>>, vector<32x128xf32>,
    return
  }
  func.func @transform_0(%arg0: i32) -> (i32, i32) {
    %c0_i32 = arith.constant 0 : i32
    %c0_i32_0 = arith.constant 0 : i32
    %c0_i32_1 = arith.constant 0 : i32
    return %c0_i32, %c0_i32_0 : i32, i32
  }
  func.func @transform_1(%arg0: i32) -> (i32, i32) {
    %c0_i32 = arith.constant 0 : i32
    %c0_i32_0 = arith.constant 0 : i32
    %c0_i32_1 = arith.constant 0 : i32
    return %c0_i32, %c0_i32_0 : i32, i32
  }
  func.func @transform_2(%arg0: i32) -> (i32, i32) {
    %c0_i32 = arith.constant 0 : i32
    %c0_i32_0 = arith.constant 0 : i32
    %c0_i32_1 = arith.constant 0 : i32
    return %c0_i32, %c0_i32_0 : i32, i32
  }
  func.func @transform_3(%arg0: i32) -> (i32, i32) {
    %c0_i32 = arith.constant 0 : i32
    %c0_i32_0 = arith.constant 0 : i32
    %c0_i32_1 = arith.constant 0 : i32
    return %c0_i32, %c0_i32_0 : i32, i32
  }
  func.func @transform_4(%arg0: i32) -> (i32, i32) {
    %c0_i32 = arith.constant 0 : i32
    %c0_i32_0 = arith.constant 0 : i32
    %c0_i32_1 = arith.constant 0 : i32
    return %c0_i32, %c0_i32_0 : i32, i32
  }
  func.func @transform_5(%arg0: i32) -> (i32, i32) {
    %c0_i32 = arith.constant 0 : i32
    %c0_i32_0 = arith.constant 0 : i32
    %c0_i32_1 = arith.constant 0 : i32
    return %c0_i32, %c0_i32_0 : i32, i32
  }
  func.func @transform_6(%arg0: i32) -> (i32, i32) {
    %c0_i32 = arith.constant 0 : i32
    %c0_i32_0 = arith.constant 0 : i32
    %c0_i32_1 = arith.constant 0 : i32
    return %c0_i32, %c0_i32_0 : i32, i32
  }
  func.func @transform_7(%arg0: i32) -> (i32, i32) {
    %c0_i32 = arith.constant 0 : i32
    %c0_i32_0 = arith.constant 0 : i32
    %c0_i32_1 = arith.constant 0 : i32
    return %c0_i32, %c0_i32_0 : i32, i32
  }
  func.func @transform_8(%arg0: i32) -> (i32, i32) {
    %c0_i32 = arith.constant 0 : i32
    %c0_i32_0 = arith.constant 0 : i32
    %c0_i32_1 = arith.constant 0 : i32
    return %c0_i32, %c0_i32_0 : i32, i32
  }
  func.func @transform_9(%arg0: i32) -> (i32, i32) {
    %c0_i32 = arith.constant 0 : i32
    %c0_i32_0 = arith.constant 0 : i32
    %c0_i32_1 = arith.constant 0 : i32
    return %c0_i32, %c0_i32_0 : i32, i32
  }
  func.func @transform_10(%arg0: i32) -> (i32, i32) {
    %c0_i32 = arith.constant 0 : i32
    %c0_i32_0 = arith.constant 0 : i32
    %c0_i32_1 = arith.constant 0 : i32
    return %c0_i32, %c0_i32_0 : i32, i32
  }
  func.func @transform_11(%arg0: i32) -> (i32, i32) {
    %c0_i32 = arith.constant 0 : i32
    %c0_i32_0 = arith.constant 0 : i32
    %c0_i32_1 = arith.constant 0 : i32
    return %c0_i32, %c0_i32_0 : i32, i32
  }
  func.func @transform_12(%arg0: i32) -> (i32, i32) {
    %c0_i32 = arith.constant 0 : i32
    %c0_i32_0 = arith.constant 0 : i32
    %c0_i32_1 = arith.constant 0 : i32
    return %c0_i32, %c0_i32_0 : i32, i32
  }
}

</mosaic_0001>

<llo_original>
// kernel: lstm_net_forward.1
$region0: #{lstm_net_forward.1}
  #allocation0 [shape = 'u32[]', space=smem, size = 0x4, offset = 0x4, fixed_abs, tag = 'smem constant byte address 0x4 - core index']
  #allocation1 [shape = 'u32[144,128]{1,0:T(1,128)}', space=vmem, size = 0x12000, scoped, tag = 'internal scratch']
  #allocation2 [shape = 'f32[32,32]{1,0:T(8,128)}', space=vmem, size = 0x4000, scoped, tag = 'scratch operand']
  %s0 = inlined_call_operand.vmem [shape: f32[32,16], index: 0, kind: input, shape index: {}]
  %s1 = inlined_call_operand.vmem [shape: f32[8,32], index: 1, kind: input, shape index: {}]
  %s2 = inlined_call_operand.vmem [shape: f32[8,32], index: 2, kind: input, shape index: {}]
  %s3 = inlined_call_operand.vmem [shape: f32[16,32], index: 3, kind: input, shape index: {}]
  %s4 = inlined_call_operand.vmem [shape: f32[1,32], index: 4, kind: input, shape index: {}]
  %s5 = inlined_call_operand.vmem [shape: f32[32,128], index: 5, kind: input, shape index: {}]
  %s6 = inlined_call_operand.vmem [shape: f32[32,128], index: 6, kind: input, shape index: {}]
  %s7 = inlined_call_operand.vmem [shape: f32[1,128], index: 7, kind: input, shape index: {}]
  %s8 = inlined_call_operand.vmem [shape: f32[32,128], index: 8, kind: input, shape index: {}]
  %s9 = inlined_call_operand.vmem [shape: f32[1,128], index: 9, kind: input, shape index: {}]
  %s10 = inlined_call_operand.vmem [shape: f32[32,128], index: 10, kind: output, shape index: {0}]
  %s11 = inlined_call_operand.vmem [shape: f32[8,32], index: 11, kind: output, shape index: {1}]
  %s12 = inlined_call_operand.vmem [shape: f32[8,32], index: 12, kind: output, shape index: {2}]
  %13 = xla_tuple %s10, %s11, %s12
  %s14 = sld [smem:[#allocation0]]
  $region66: #{lstm_net_forward.1} parent=0
    _
  %s16 = ssub.s32 1, %s14
  %s17 = scalar_select 0, %s16, %s14
  // Predicated region
  $region2: #{lstm_net_forward.1} parent=0 // pred_check
    _
  $region3: #{lstm_net_forward.1} parent=0 // pred_check_branch
    %19 = sbr.rel (0) target = $region5
  $region4: #{lstm_net_forward.1} parent=0 // pred_region
    _
  $region5: #{lstm_net_forward.1} parent=0 // pred_fallthru
    _
  // Predicated region
  $region6: #{lstm_net_forward.1} parent=0 // pred_check
    _
  $region7: #{lstm_net_forward.1} parent=0 // pred_check_branch
    %21 = sbr.rel (0) target = $region9
  $region8: #{lstm_net_forward.1} parent=0 // pred_region
    _
  $region9: #{lstm_net_forward.1} parent=0 // pred_fallthru
    _
  // Predicated region
  $region10: #{lstm_net_forward.1} parent=0 // pred_check
    _
  $region11: #{lstm_net_forward.1} parent=0 // pred_check_branch
    %23 = sbr.rel (0) target = $region13
  $region12: #{lstm_net_forward.1} parent=0 // pred_region
    _
  $region13: #{lstm_net_forward.1} parent=0 // pred_fallthru
    _
  // Predicated region
  $region14: #{lstm_net_forward.1} parent=0 // pred_check
    _
  $region15: #{lstm_net_forward.1} parent=0 // pred_check_branch
    %25 = sbr.rel (0) target = $region17
  $region16: #{lstm_net_forward.1} parent=0 // pred_region
    _
  $region17: #{lstm_net_forward.1} parent=0 // pred_fallthru
    _
  // Predicated region
  $region18: #{lstm_net_forward.1} parent=0 // pred_check
    _
  $region19: #{lstm_net_forward.1} parent=0 // pred_check_branch
    %27 = sbr.rel (0) target = $region21
  $region20: #{lstm_net_forward.1} parent=0 // pred_region
    _
  $region21: #{lstm_net_forward.1} parent=0 // pred_fallthru
    _
  // Predicated region
  $region22: #{lstm_net_forward.1} parent=0 // pred_check
    _
  $region23: #{lstm_net_forward.1} parent=0 // pred_check_branch
    %29 = sbr.rel (0) target = $region25
  $region24: #{lstm_net_forward.1} parent=0 // pred_region
    _
  $region25: #{lstm_net_forward.1} parent=0 // pred_fallthru
    _
  // Predicated region
  $region26: #{lstm_net_forward.1} parent=0 // pred_check
    _
  $region27: #{lstm_net_forward.1} parent=0 // pred_check_branch
    %31 = sbr.rel (0) target = $region29
  $region28: #{lstm_net_forward.1} parent=0 // pred_region
    _
  $region29: #{lstm_net_forward.1} parent=0 // pred_fallthru
    _
  // Predicated region
  $region30: #{lstm_net_forward.1} parent=0 // pred_check
    _
  $region31: #{lstm_net_forward.1} parent=0 // pred_check_branch
    %33 = sbr.rel (0) target = $region33
  $region32: #{lstm_net_forward.1} parent=0 // pred_region
    _
  $region33: #{lstm_net_forward.1} parent=0 // pred_fallthru
    _
  // Predicated region
  $region34: #{lstm_net_forward.1} parent=0 // pred_check
    _
  $region35: #{lstm_net_forward.1} parent=0 // pred_check_branch
    %35 = sbr.rel (0) target = $region37
  $region36: #{lstm_net_forward.1} parent=0 // pred_region
    _
  $region37: #{lstm_net_forward.1} parent=0 // pred_fallthru
    _
  // Predicated region
  $region38: #{lstm_net_forward.1} parent=0 // pred_check
    _
  $region39: #{lstm_net_forward.1} parent=0 // pred_check_branch
    %37 = sbr.rel (0) target = $region41
  $region40: #{lstm_net_forward.1} parent=0 // pred_region
    _
  $region41: #{lstm_net_forward.1} parent=0 // pred_fallthru
    _
  %v38 = vld [vmem:[%s0] sm:$0xff]
  %v39 = vld [vmem:[%s0 + $0x8] sm:$0xff]
  %v40 = vld [vmem:[%s0 + $0x10] sm:$0xff]
  %v41 = vld [vmem:[%s0 + $0x18] sm:$0xff]
  %v42 = vld [vmem:[%s3] sm:$0xff]
  %v43 = vld [vmem:[%s3 + $0x8] sm:$0xff]
  %v44 = vld [vmem:[%s4] sm:$0x1]
  %v46 = vlaneseq
  %v47 = vshrl.u32 %v46, 7
  %v48 = vsub.s32 0, %v47
  %v49 = vrot.slane %v44, %v48
  %vm51 = vcmask 130048
  %v53 = vsel %vm51, %v38, 0
  %v56 = vsel %vm51, %v39, 0
  %v59 = vsel %vm51, %v40, 0
  %v62 = vsel %vm51, %v41, 0
  %64 = vmatprep.subr.mxu0 0.0
  %65 = vmatpush1.msra.mxu0 0.0
  %66 = vmatprep.subr.mxu0 0.0
  %67 = vmatpush1.msra.mxu0 0.0
  %68 = vmatprep.subr.mxu0 0.0
  %69 = vmatpush1.msra.mxu0 0.0
  %70 = vmatprep.subr.mxu0 0.0
  %71 = vmatpush1.msra.mxu0 0.0
  %72 = vmatprep.subr.mxu0 0.0
  %73 = vmatpush1.msra.mxu0 0.0
  %74 = vmatprep.subr.mxu0 0.0
  %75 = vmatpush1.msra.mxu0 0.0
  %76 = vmatprep.subr.mxu0 0.0
  %77 = vmatpush1.msra.mxu0 0.0
  %78 = vmatprep.subr.mxu0 0.0
  %79 = vmatpush1.msra.mxu0 0.0
  %80 = vmatprep.subr.mxu0 0.0
  %81 = vmatpush1.msra.mxu0 0.0
  %82 = vmatprep.subr.mxu0 0.0
  %83 = vmatpush1.msra.mxu0 0.0
  %84 = vmatprep.subr.mxu0 0.0
  %85 = vmatpush1.msra.mxu0 0.0
  %86 = vmatprep.subr.mxu0 0.0
  %87 = vmatpush1.msra.mxu0 0.0
  %88 = vmatprep.subr.mxu0 0.0
  %89 = vmatpush1.msra.mxu0 0.0
  %90 = vmatprep.subr.mxu0 0.0
  %91 = vmatpush1.msra.mxu0 0.0
  %92 = vmatprep.subr.mxu0 0.0
  %93 = vmatpush1.msra.mxu0 %v43
  %94 = vmatprep.subr.mxu0 0.0
  %95 = vmatpush1.msra.mxu0 %v42
  %96 = vmatprep.subr.mxu0 0.0
  %97 = vmatpush2.msra.mxu0 0.0
  %98 = vmatprep.subr.mxu0 0.0
  %99 = vmatpush2.msra.mxu0 0.0
  %100 = vmatprep.subr.mxu0 0.0
  %101 = vmatpush2.msra.mxu0 0.0
  %102 = vmatprep.subr.mxu0 0.0
  %103 = vmatpush2.msra.mxu0 0.0
  %104 = vmatprep.subr.mxu0 0.0
  %105 = vmatpush2.msra.mxu0 0.0
  %106 = vmatprep.subr.mxu0 0.0
  %107 = vmatpush2.msra.mxu0 0.0
  %108 = vmatprep.subr.mxu0 0.0
  %109 = vmatpush2.msra.mxu0 0.0
  %110 = vmatprep.subr.mxu0 0.0
  %111 = vmatpush2.msra.mxu0 0.0
  %112 = vmatprep.subr.mxu0 0.0
  %113 = vmatpush2.msra.mxu0 0.0
  %114 = vmatprep.subr.mxu0 0.0
  %115 = vmatpush2.msra.mxu0 0.0
  %116 = vmatprep.subr.mxu0 0.0
  %117 = vmatpush2.msra.mxu0 0.0
  %118 = vmatprep.subr.mxu0 0.0
  %119 = vmatpush2.msra.mxu0 0.0
  %120 = vmatprep.subr.mxu0 0.0
  %121 = vmatpush2.msra.mxu0 0.0
  %122 = vmatprep.subr.mxu0 0.0
  %123 = vmatpush2.msra.mxu0 0.0
  %124 = vmatprep.subr.mxu0 0.0
  %125 = vmatpush2.msra.mxu0 0.0
  %126 = vmatprep.subr.mxu0 0.0
  %127 = vmatpush2.msra.mxu0 0.0
  %128 = vmatprep.mubr.f32.mxu0 0.0
  %129 = vmatmul.mubr.f32.gmra.mxu0 %v53
  %v130 = vpop.f32.mrf.mxu0
  %v131 = vadd.f32 %v49, %v130
  %v132 = vpop.f32.mrf.mxu0
  %133 = vmatprep.mubr.f32.mxu0 0.0
  %134 = vmatmul.mubr.f32.gmra.mxu0 %v56
  %v135 = vpop.f32.mrf.mxu0
  %v136 = vadd.f32 %v49, %v135
  %v137 = vpop.f32.mrf.mxu0
  %138 = vmatprep.mubr.f32.mxu0 0.0
  %139 = vmatmul.mubr.f32.gmra.mxu0 %v59
  %v140 = vpop.f32.mrf.mxu0
  %v141 = vadd.f32 %v49, %v140
  %v142 = vpop.f32.mrf.mxu0
  %143 = vmatprep.mubr.f32.mxu0 0.0
  %144 = vmatmul.mubr.f32.gmra.mxu0 %v62
  %v145 = vpop.f32.mrf.mxu0
  %v146 = vadd.f32 %v49, %v145
  %v147 = vpop.f32.mrf.mxu0
  %148 = vdwg.mxu0
  %v149 = vtanh.pop %v131
  %v150 = vtanh.pop %v136
  %v151 = vtanh.pop %v141
  %v152 = vtanh.pop %v146
  %v153 = vld [vmem:[%s5] sm:$0xff]
  %v154 = vld [vmem:[%s5 + $0x8] sm:$0xff]
  %v155 = vld [vmem:[%s5 + $0x10] sm:$0xff]
  %v156 = vld [vmem:[%s5 + $0x18] sm:$0xff]
  %v157 = vld [vmem:[%s7] sm:$0x1]
  %v159 = vlaneseq
  %v160 = vshrl.u32 %v159, 7
  %v161 = vsub.s32 0, %v160
  %v162 = vrot.slane %v157, %v161
  %vm164 = vcmask 261120
  %v166 = vsel %vm164, %v149, 0
  %v169 = vsel %vm164, %v150, 0
  %v172 = vsel %vm164, %v151, 0
  %v175 = vsel %vm164, %v152, 0
  %177 = vmatprep.subr.mxu0 0.0
  %178 = vmatpush1.msra.mxu0 0.0
  %179 = vmatprep.subr.mxu0 0.0
  %180 = vmatpush1.msra.mxu0 0.0
  %181 = vmatprep.subr.mxu0 0.0
  %182 = vmatpush1.msra.mxu0 0.0
  %183 = vmatprep.subr.mxu0 0.0
  %184 = vmatpush1.msra.mxu0 0.0
  %185 = vmatprep.subr.mxu0 0.0
  %186 = vmatpush1.msra.mxu0 0.0
  %187 = vmatprep.subr.mxu0 0.0
  %188 = vmatpush1.msra.mxu0 0.0
  %189 = vmatprep.subr.mxu0 0.0
  %190 = vmatpush1.msra.mxu0 0.0
  %191 = vmatprep.subr.mxu0 0.0
  %192 = vmatpush1.msra.mxu0 0.0
  %193 = vmatprep.subr.mxu0 0.0
  %194 = vmatpush1.msra.mxu0 0.0
  %195 = vmatprep.subr.mxu0 0.0
  %196 = vmatpush1.msra.mxu0 0.0
  %197 = vmatprep.subr.mxu0 0.0
  %198 = vmatpush1.msra.mxu0 0.0
  %199 = vmatprep.subr.mxu0 0.0
  %200 = vmatpush1.msra.mxu0 0.0
  %201 = vmatprep.subr.mxu0 0.0
  %202 = vmatpush1.msra.mxu0 %v156
  %203 = vmatprep.subr.mxu0 0.0
  %204 = vmatpush1.msra.mxu0 %v155
  %205 = vmatprep.subr.mxu0 0.0
  %206 = vmatpush1.msra.mxu0 %v154
  %207 = vmatprep.subr.mxu0 0.0
  %208 = vmatpush1.msra.mxu0 %v153
  %209 = vmatprep.subr.mxu0 0.0
  %210 = vmatpush2.msra.mxu0 0.0
  %211 = vmatprep.subr.mxu0 0.0
  %212 = vmatpush2.msra.mxu0 0.0
  %213 = vmatprep.subr.mxu0 0.0
  %214 = vmatpush2.msra.mxu0 0.0
  %215 = vmatprep.subr.mxu0 0.0
  %216 = vmatpush2.msra.mxu0 0.0
  %217 = vmatprep.subr.mxu0 0.0
  %218 = vmatpush2.msra.mxu0 0.0
  %219 = vmatprep.subr.mxu0 0.0
  %220 = vmatpush2.msra.mxu0 0.0
  %221 = vmatprep.subr.mxu0 0.0
  %222 = vmatpush2.msra.mxu0 0.0
  %223 = vmatprep.subr.mxu0 0.0
  %224 = vmatpush2.msra.mxu0 0.0
  %225 = vmatprep.subr.mxu0 0.0
  %226 = vmatpush2.msra.mxu0 0.0
  %227 = vmatprep.subr.mxu0 0.0
  %228 = vmatpush2.msra.mxu0 0.0
  %229 = vmatprep.subr.mxu0 0.0
  %230 = vmatpush2.msra.mxu0 0.0
  %231 = vmatprep.subr.mxu0 0.0
  %232 = vmatpush2.msra.mxu0 0.0
  %233 = vmatprep.subr.mxu0 0.0
  %234 = vmatpush2.msra.mxu0 0.0
  %235 = vmatprep.subr.mxu0 0.0
  %236 = vmatpush2.msra.mxu0 0.0
  %237 = vmatprep.subr.mxu0 0.0
  %238 = vmatpush2.msra.mxu0 0.0
  %239 = vmatprep.subr.mxu0 0.0
  %240 = vmatpush2.msra.mxu0 0.0
  %241 = vmatprep.mubr.f32.mxu0 0.0
  %242 = vmatmul.mubr.f32.gmra.mxu0 %v166
  %v243 = vpop.f32.mrf.mxu0
  %v244 = vadd.f32 %v162, %v243
  %v245 = vpop.f32.mrf.mxu0
  %246 = vmatprep.mubr.f32.mxu0 0.0
  %247 = vmatmul.mubr.f32.gmra.mxu0 %v169
  %v248 = vpop.f32.mrf.mxu0
  %v249 = vadd.f32 %v162, %v248
  %v250 = vpop.f32.mrf.mxu0
  %251 = vmatprep.mubr.f32.mxu0 0.0
  %252 = vmatmul.mubr.f32.gmra.mxu0 %v172
  %v253 = vpop.f32.mrf.mxu0
  %v254 = vadd.f32 %v162, %v253
  %v255 = vpop.f32.mrf.mxu0
  %256 = vmatprep.mubr.f32.mxu0 0.0
  %257 = vmatmul.mubr.f32.gmra.mxu0 %v175
  %v258 = vpop.f32.mrf.mxu0
  %v259 = vadd.f32 %v162, %v258
  %v260 = vpop.f32.mrf.mxu0
  %261 = vdwg.mxu0
  %v262 = vld [vmem:[%s1] sm:$0xff]
  %v263 = vld [vmem:[%s2] sm:$0xff]
  %v264 = vld [vmem:[%s6] sm:$0xff]
  %v265 = vld [vmem:[%s6 + $0x8] sm:$0xff]
  %v266 = vld [vmem:[%s6 + $0x10] sm:$0xff]
  %v267 = vld [vmem:[%s6 + $0x18] sm:$0xff]
  %v269 = vsel %vm164, %v262, 0
  %271 = vmatprep.subr.mxu0 0.0
  %272 = vmatpush1.msra.mxu0 0.0
  %273 = vmatprep.subr.mxu0 0.0
  %274 = vmatpush1.msra.mxu0 0.0
  %275 = vmatprep.subr.mxu0 0.0
  %276 = vmatpush1.msra.mxu0 0.0
  %277 = vmatprep.subr.mxu0 0.0
  %278 = vmatpush1.msra.mxu0 0.0
  %279 = vmatprep.subr.mxu0 0.0
  %280 = vmatpush1.msra.mxu0 0.0
  %281 = vmatprep.subr.mxu0 0.0
  %282 = vmatpush1.msra.mxu0 0.0
  %283 = vmatprep.subr.mxu0 0.0
  %284 = vmatpush1.msra.mxu0 0.0
  %285 = vmatprep.subr.mxu0 0.0
  %286 = vmatpush1.msra.mxu0 0.0
  %287 = vmatprep.subr.mxu0 0.0
  %288 = vmatpush1.msra.mxu0 0.0
  %289 = vmatprep.subr.mxu0 0.0
  %290 = vmatpush1.msra.mxu0 0.0
  %291 = vmatprep.subr.mxu0 0.0
  %292 = vmatpush1.msra.mxu0 0.0
  %293 = vmatprep.subr.mxu0 0.0
  %294 = vmatpush1.msra.mxu0 0.0
  %295 = vmatprep.subr.mxu0 0.0
  %296 = vmatpush1.msra.mxu0 %v267
  %297 = vmatprep.subr.mxu0 0.0
  %298 = vmatpush1.msra.mxu0 %v266
  %299 = vmatprep.subr.mxu0 0.0
  %300 = vmatpush1.msra.mxu0 %v265
  %301 = vmatprep.subr.mxu0 0.0
  %302 = vmatpush1.msra.mxu0 %v264
  %303 = vmatprep.subr.mxu0 0.0
  %304 = vmatpush2.msra.mxu0 0.0
  %305 = vmatprep.subr.mxu0 0.0
  %306 = vmatpush2.msra.mxu0 0.0
  %307 = vmatprep.subr.mxu0 0.0
  %308 = vmatpush2.msra.mxu0 0.0
  %309 = vmatprep.subr.mxu0 0.0
  %310 = vmatpush2.msra.mxu0 0.0
  %311 = vmatprep.subr.mxu0 0.0
  %312 = vmatpush2.msra.mxu0 0.0
  %313 = vmatprep.subr.mxu0 0.0
  %314 = vmatpush2.msra.mxu0 0.0
  %315 = vmatprep.subr.mxu0 0.0
  %316 = vmatpush2.msra.mxu0 0.0
  %317 = vmatprep.subr.mxu0 0.0
  %318 = vmatpush2.msra.mxu0 0.0
  %319 = vmatprep.subr.mxu0 0.0
  %320 = vmatpush2.msra.mxu0 0.0
  %321 = vmatprep.subr.mxu0 0.0
  %322 = vmatpush2.msra.mxu0 0.0
  %323 = vmatprep.subr.mxu0 0.0
  %324 = vmatpush2.msra.mxu0 0.0
  %325 = vmatprep.subr.mxu0 0.0
  %326 = vmatpush2.msra.mxu0 0.0
  %327 = vmatprep.subr.mxu0 0.0
  %328 = vmatpush2.msra.mxu0 0.0
  %329 = vmatprep.subr.mxu0 0.0
  %330 = vmatpush2.msra.mxu0 0.0
  %331 = vmatprep.subr.mxu0 0.0
  %332 = vmatpush2.msra.mxu0 0.0
  %333 = vmatprep.subr.mxu0 0.0
  %334 = vmatpush2.msra.mxu0 0.0
  %335 = vmatprep.mubr.f32.mxu0 0.0
  %336 = vmatmul.mubr.f32.gmra.mxu0 %v269
  %v337 = vpop.f32.mrf.mxu0
  %v338 = vadd.f32 0.0, %v337
  %v339 = vpop.f32.mrf.mxu0
  %340 = vdwg.mxu0
  %v341 = vadd.f32 %v244, %v338
  %v342 = vxor.u32 %v341, 2147483648
  %v343 = vmul.f32 %v342, 1.442695
  %v344 = vpow.pop %v343
  %v345 = vadd.f32 %v344, 1.0
  %v346 = vrcp.pop %v345
  %v347 = vmul.f32 1.0, %v346
  %v348 = vtanh.pop %v341
  %350 = vrot.lane.b32.xlu0 %v263, 32
  %v351 = vpop.permute.xlu0 %350
  %v353 = vmul.f32 %v347, %v351
  %355 = vrot.lane.b32.xlu0 %v348, 64
  %v356 = vpop.permute.xlu0 %355
  %v358 = vmul.f32 %v347, %v356
  %360 = vrot.lane.b32.xlu0 %v358, 32
  %v361 = vpop.permute.xlu0 %360
  %v363 = vadd.f32 %v353, %v361
  %v364 = vtanh.pop %v363
  %366 = vrot.lane.b32.xlu0 %v364, 64
  %v367 = vpop.permute.xlu0 %366
  %v369 = vmul.f32 %v347, %v367
  %371 = vrot.lane.b32.xlu0 %v369, 32
  %v372 = vpop.permute.xlu0 %371
  %374 = vst.msk [vmem:[#allocation2] sm:$0xff] %vm164, %v372
  %v375 = vsel %vm164, %v372, 0
  %377 = vmatprep.subr.mxu0 0.0
  %378 = vmatpush1.msra.mxu0 0.0
  %379 = vmatprep.subr.mxu0 0.0
  %380 = vmatpush1.msra.mxu0 0.0
  %381 = vmatprep.subr.mxu0 0.0
  %382 = vmatpush1.msra.mxu0 0.0
  %383 = vmatprep.subr.mxu0 0.0
  %384 = vmatpush1.msra.mxu0 0.0
  %385 = vmatprep.subr.mxu0 0.0
  %386 = vmatpush1.msra.mxu0 0.0
  %387 = vmatprep.subr.mxu0 0.0
  %388 = vmatpush1.msra.mxu0 0.0
  %389 = vmatprep.subr.mxu0 0.0
  %390 = vmatpush1.msra.mxu0 0.0
  %391 = vmatprep.subr.mxu0 0.0
  %392 = vmatpush1.msra.mxu0 0.0
  %393 = vmatprep.subr.mxu0 0.0
  %394 = vmatpush1.msra.mxu0 0.0
  %395 = vmatprep.subr.mxu0 0.0
  %396 = vmatpush1.msra.mxu0 0.0
  %397 = vmatprep.subr.mxu0 0.0
  %398 = vmatpush1.msra.mxu0 0.0
  %399 = vmatprep.subr.mxu0 0.0
  %400 = vmatpush1.msra.mxu0 0.0
  %401 = vmatprep.subr.mxu0 0.0
  %402 = vmatpush1.msra.mxu0 %v267
  %403 = vmatprep.subr.mxu0 0.0
  %404 = vmatpush1.msra.mxu0 %v266
  %405 = vmatprep.subr.mxu0 0.0
  %406 = vmatpush1.msra.mxu0 %v265
  %407 = vmatprep.subr.mxu0 0.0
  %408 = vmatpush1.msra.mxu0 %v264
  %409 = vmatprep.subr.mxu0 0.0
  %410 = vmatpush2.msra.mxu0 0.0
  %411 = vmatprep.subr.mxu0 0.0
  %412 = vmatpush2.msra.mxu0 0.0
  %413 = vmatprep.subr.mxu0 0.0
  %414 = vmatpush2.msra.mxu0 0.0
  %415 = vmatprep.subr.mxu0 0.0
  %416 = vmatpush2.msra.mxu0 0.0
  %417 = vmatprep.subr.mxu0 0.0
  %418 = vmatpush2.msra.mxu0 0.0
  %419 = vmatprep.subr.mxu0 0.0
  %420 = vmatpush2.msra.mxu0 0.0
  %421 = vmatprep.subr.mxu0 0.0
  %422 = vmatpush2.msra.mxu0 0.0
  %423 = vmatprep.subr.mxu0 0.0
  %424 = vmatpush2.msra.mxu0 0.0
  %425 = vmatprep.subr.mxu0 0.0
  %426 = vmatpush2.msra.mxu0 0.0
  %427 = vmatprep.subr.mxu0 0.0
  %428 = vmatpush2.msra.mxu0 0.0
  %429 = vmatprep.subr.mxu0 0.0
  %430 = vmatpush2.msra.mxu0 0.0
  %431 = vmatprep.subr.mxu0 0.0
  %432 = vmatpush2.msra.mxu0 0.0
  %433 = vmatprep.subr.mxu0 0.0
  %434 = vmatpush2.msra.mxu0 0.0
  %435 = vmatprep.subr.mxu0 0.0
  %436 = vmatpush2.msra.mxu0 0.0
  %437 = vmatprep.subr.mxu0 0.0
  %438 = vmatpush2.msra.mxu0 0.0
  %439 = vmatprep.subr.mxu0 0.0
  %440 = vmatpush2.msra.mxu0 0.0
  %441 = vmatprep.mubr.f32.mxu0 0.0
  %442 = vmatmul.mubr.f32.gmra.mxu0 %v375
  %v443 = vpop.f32.mrf.mxu0
  %v444 = vadd.f32 0.0, %v443
  %v445 = vpop.f32.mrf.mxu0
  %446 = vdwg.mxu0
  %v447 = vadd.f32 %v249, %v444
  %v448 = vxor.u32 %v447, 2147483648
  %v449 = vmul.f32 %v448, 1.442695
  %v450 = vpow.pop %v449
  %v451 = vadd.f32 %v450, 1.0
  %v452 = vrcp.pop %v451
  %v453 = vmul.f32 1.0, %v452
  %v454 = vtanh.pop %v447
  %v455 = vmul.f32 %v453, %v363
  %457 = vrot.lane.b32.xlu0 %v454, 64
  %v458 = vpop.permute.xlu0 %457
  %v460 = vmul.f32 %v453, %v458
  %462 = vrot.lane.b32.xlu0 %v460, 32
  %v463 = vpop.permute.xlu0 %462
  %v465 = vadd.f32 %v455, %v463
  %v466 = vtanh.pop %v465
  %468 = vrot.lane.b32.xlu0 %v466, 64
  %v469 = vpop.permute.xlu0 %468
  %v471 = vmul.f32 %v453, %v469
  %473 = vrot.lane.b32.xlu0 %v471, 32
  %v474 = vpop.permute.xlu0 %473
  %476 = vst.msk [vmem:[#allocation2 + $0x8] sm:$0xff] %vm164, %v474
  %v477 = vsel %vm164, %v474, 0
  %479 = vmatprep.subr.mxu0 0.0
  %480 = vmatpush1.msra.mxu0 0.0
  %481 = vmatprep.subr.mxu0 0.0
  %482 = vmatpush1.msra.mxu0 0.0
  %483 = vmatprep.subr.mxu0 0.0
  %484 = vmatpush1.msra.mxu0 0.0
  %485 = vmatprep.subr.mxu0 0.0
  %486 = vmatpush1.msra.mxu0 0.0
  %487 = vmatprep.subr.mxu0 0.0
  %488 = vmatpush1.msra.mxu0 0.0
  %489 = vmatprep.subr.mxu0 0.0
  %490 = vmatpush1.msra.mxu0 0.0
  %491 = vmatprep.subr.mxu0 0.0
  %492 = vmatpush1.msra.mxu0 0.0
  %493 = vmatprep.subr.mxu0 0.0
  %494 = vmatpush1.msra.mxu0 0.0
  %495 = vmatprep.subr.mxu0 0.0
  %496 = vmatpush1.msra.mxu0 0.0
  %497 = vmatprep.subr.mxu0 0.0
  %498 = vmatpush1.msra.mxu0 0.0
  %499 = vmatprep.subr.mxu0 0.0
  %500 = vmatpush1.msra.mxu0 0.0
  %501 = vmatprep.subr.mxu0 0.0
  %502 = vmatpush1.msra.mxu0 0.0
  %503 = vmatprep.subr.mxu0 0.0
  %504 = vmatpush1.msra.mxu0 %v267
  %505 = vmatprep.subr.mxu0 0.0
  %506 = vmatpush1.msra.mxu0 %v266
  %507 = vmatprep.subr.mxu0 0.0
  %508 = vmatpush1.msra.mxu0 %v265
  %509 = vmatprep.subr.mxu0 0.0
  %510 = vmatpush1.msra.mxu0 %v264
  %511 = vmatprep.subr.mxu0 0.0
  %512 = vmatpush2.msra.mxu0 0.0
  %513 = vmatprep.subr.mxu0 0.0
  %514 = vmatpush2.msra.mxu0 0.0
  %515 = vmatprep.subr.mxu0 0.0
  %516 = vmatpush2.msra.mxu0 0.0
  %517 = vmatprep.subr.mxu0 0.0
  %518 = vmatpush2.msra.mxu0 0.0
  %519 = vmatprep.subr.mxu0 0.0
  %520 = vmatpush2.msra.mxu0 0.0
  %521 = vmatprep.subr.mxu0 0.0
  %522 = vmatpush2.msra.mxu0 0.0
  %523 = vmatprep.subr.mxu0 0.0
  %524 = vmatpush2.msra.mxu0 0.0
  %525 = vmatprep.subr.mxu0 0.0
  %526 = vmatpush2.msra.mxu0 0.0
  %527 = vmatprep.subr.mxu0 0.0
  %528 = vmatpush2.msra.mxu0 0.0
  %529 = vmatprep.subr.mxu0 0.0
  %530 = vmatpush2.msra.mxu0 0.0
  %531 = vmatprep.subr.mxu0 0.0
  %532 = vmatpush2.msra.mxu0 0.0
  %533 = vmatprep.subr.mxu0 0.0
  %534 = vmatpush2.msra.mxu0 0.0
  %535 = vmatprep.subr.mxu0 0.0
  %536 = vmatpush2.msra.mxu0 0.0
  %537 = vmatprep.subr.mxu0 0.0
  %538 = vmatpush2.msra.mxu0 0.0
  %539 = vmatprep.subr.mxu0 0.0
  %540 = vmatpush2.msra.mxu0 0.0
  %541 = vmatprep.subr.mxu0 0.0
  %542 = vmatpush2.msra.mxu0 0.0
  %543 = vmatprep.mubr.f32.mxu0 0.0
  %544 = vmatmul.mubr.f32.gmra.mxu0 %v477
  %v545 = vpop.f32.mrf.mxu0
  %v546 = vadd.f32 0.0, %v545
  %v547 = vpop.f32.mrf.mxu0
  %548 = vdwg.mxu0
  %v549 = vadd.f32 %v254, %v546
  %v550 = vxor.u32 %v549, 2147483648
  %v551 = vmul.f32 %v550, 1.442695
  %v552 = vpow.pop %v551
  %v553 = vadd.f32 %v552, 1.0
  %v554 = vrcp.pop %v553
  %v555 = vmul.f32 1.0, %v554
  %v556 = vtanh.pop %v549
  %v557 = vmul.f32 %v555, %v465
  %559 = vrot.lane.b32.xlu0 %v556, 64
  %v560 = vpop.permute.xlu0 %559
  %v562 = vmul.f32 %v555, %v560
  %564 = vrot.lane.b32.xlu0 %v562, 32
  %v565 = vpop.permute.xlu0 %564
  %v567 = vadd.f32 %v557, %v565
  %v568 = vtanh.pop %v567
  %570 = vrot.lane.b32.xlu0 %v568, 64
  %v571 = vpop.permute.xlu0 %570
  %v573 = vmul.f32 %v555, %v571
  %575 = vrot.lane.b32.xlu0 %v573, 32
  %v576 = vpop.permute.xlu0 %575
  %578 = vst.msk [vmem:[#allocation2 + $0x10] sm:$0xff] %vm164, %v576
  %v579 = vsel %vm164, %v576, 0
  %581 = vmatprep.subr.mxu0 0.0
  %582 = vmatpush1.msra.mxu0 0.0
  %583 = vmatprep.subr.mxu0 0.0
  %584 = vmatpush1.msra.mxu0 0.0
  %585 = vmatprep.subr.mxu0 0.0
  %586 = vmatpush1.msra.mxu0 0.0
  %587 = vmatprep.subr.mxu0 0.0
  %588 = vmatpush1.msra.mxu0 0.0
  %589 = vmatprep.subr.mxu0 0.0
  %590 = vmatpush1.msra.mxu0 0.0
  %591 = vmatprep.subr.mxu0 0.0
  %592 = vmatpush1.msra.mxu0 0.0
  %593 = vmatprep.subr.mxu0 0.0
  %594 = vmatpush1.msra.mxu0 0.0
  %595 = vmatprep.subr.mxu0 0.0
  %596 = vmatpush1.msra.mxu0 0.0
  %597 = vmatprep.subr.mxu0 0.0
  %598 = vmatpush1.msra.mxu0 0.0
  %599 = vmatprep.subr.mxu0 0.0
  %600 = vmatpush1.msra.mxu0 0.0
  %601 = vmatprep.subr.mxu0 0.0
  %602 = vmatpush1.msra.mxu0 0.0
  %603 = vmatprep.subr.mxu0 0.0
  %604 = vmatpush1.msra.mxu0 0.0
  %605 = vmatprep.subr.mxu0 0.0
  %606 = vmatpush1.msra.mxu0 %v267
  %607 = vmatprep.subr.mxu0 0.0
  %608 = vmatpush1.msra.mxu0 %v266
  %609 = vmatprep.subr.mxu0 0.0
  %610 = vmatpush1.msra.mxu0 %v265
  %611 = vmatprep.subr.mxu0 0.0
  %612 = vmatpush1.msra.mxu0 %v264
  %613 = vmatprep.subr.mxu0 0.0
  %614 = vmatpush2.msra.mxu0 0.0
  %615 = vmatprep.subr.mxu0 0.0
  %616 = vmatpush2.msra.mxu0 0.0
  %617 = vmatprep.subr.mxu0 0.0
  %618 = vmatpush2.msra.mxu0 0.0
  %619 = vmatprep.subr.mxu0 0.0
  %620 = vmatpush2.msra.mxu0 0.0
  %621 = vmatprep.subr.mxu0 0.0
  %622 = vmatpush2.msra.mxu0 0.0
  %623 = vmatprep.subr.mxu0 0.0
  %624 = vmatpush2.msra.mxu0 0.0
  %625 = vmatprep.subr.mxu0 0.0
  %626 = vmatpush2.msra.mxu0 0.0
  %627 = vmatprep.subr.mxu0 0.0
  %628 = vmatpush2.msra.mxu0 0.0
  %629 = vmatprep.subr.mxu0 0.0
  %630 = vmatpush2.msra.mxu0 0.0
  %631 = vmatprep.subr.mxu0 0.0
  %632 = vmatpush2.msra.mxu0 0.0
  %633 = vmatprep.subr.mxu0 0.0
  %634 = vmatpush2.msra.mxu0 0.0
  %635 = vmatprep.subr.mxu0 0.0
  %636 = vmatpush2.msra.mxu0 0.0
  %637 = vmatprep.subr.mxu0 0.0
  %638 = vmatpush2.msra.mxu0 0.0
  %639 = vmatprep.subr.mxu0 0.0
  %640 = vmatpush2.msra.mxu0 0.0
  %641 = vmatprep.subr.mxu0 0.0
  %642 = vmatpush2.msra.mxu0 0.0
  %643 = vmatprep.subr.mxu0 0.0
  %644 = vmatpush2.msra.mxu0 0.0
  %645 = vmatprep.mubr.f32.mxu0 0.0
  %646 = vmatmul.mubr.f32.gmra.mxu0 %v579
  %v647 = vpop.f32.mrf.mxu0
  %v648 = vadd.f32 0.0, %v647
  %v649 = vpop.f32.mrf.mxu0
  %650 = vdwg.mxu0
  %v651 = vadd.f32 %v259, %v648
  %v652 = vxor.u32 %v651, 2147483648
  %v653 = vmul.f32 %v652, 1.442695
  %v654 = vpow.pop %v653
  %v655 = vadd.f32 %v654, 1.0
  %v656 = vrcp.pop %v655
  %v657 = vmul.f32 1.0, %v656
  %v658 = vtanh.pop %v651
  %v659 = vmul.f32 %v657, %v567
  %661 = vrot.lane.b32.xlu0 %v658, 64
  %v662 = vpop.permute.xlu0 %661
  %v664 = vmul.f32 %v657, %v662
  %666 = vrot.lane.b32.xlu0 %v664, 32
  %v667 = vpop.permute.xlu0 %666
  %v669 = vadd.f32 %v659, %v667
  %v670 = vtanh.pop %v669
  %672 = vrot.lane.b32.xlu0 %v670, 64
  %v673 = vpop.permute.xlu0 %672
  %v675 = vmul.f32 %v657, %v673
  %677 = vrot.lane.b32.xlu0 %v675, 32
  %v678 = vpop.permute.xlu0 %677
  %680 = vst.msk [vmem:[#allocation2 + $0x18] sm:$0xff] %vm164, %v678
  %681 = vst.msk [vmem:[%s11] sm:$0xff] %vm164, %v678
  %683 = vrot.lane.b32.xlu0 %v669, 96
  %v684 = vpop.permute.xlu0 %683
  %686 = vst.msk [vmem:[%s12] sm:$0xff] %vm164, %v684
  %v687 = vld [vmem:[#allocation2] sm:$0xff]
  %v688 = vld [vmem:[#allocation2 + $0x8] sm:$0xff]
  %v689 = vld [vmem:[#allocation2 + $0x10] sm:$0xff]
  %v690 = vld [vmem:[#allocation2 + $0x18] sm:$0xff]
  %v691 = vld [vmem:[%s8] sm:$0xff]
  %v692 = vld [vmem:[%s8 + $0x8] sm:$0xff]
  %v693 = vld [vmem:[%s8 + $0x10] sm:$0xff]
  %v694 = vld [vmem:[%s8 + $0x18] sm:$0xff]
  %v695 = vld [vmem:[%s9] sm:$0x1]
  %v697 = vlaneseq
  %v698 = vshrl.u32 %v697, 7
  %v699 = vsub.s32 0, %v698
  %v700 = vrot.slane %v695, %v699
  %v703 = vsel %vm164, %v687, 0
  %v706 = vsel %vm164, %v688, 0
  %v709 = vsel %vm164, %v689, 0
  %v712 = vsel %vm164, %v690, 0
  %714 = vmatprep.subr.mxu0 0.0
  %715 = vmatpush1.msra.mxu0 0.0
  %716 = vmatprep.subr.mxu0 0.0
  %717 = vmatpush1.msra.mxu0 0.0
  %718 = vmatprep.subr.mxu0 0.0
  %719 = vmatpush1.msra.mxu0 0.0
  %720 = vmatprep.subr.mxu0 0.0
  %721 = vmatpush1.msra.mxu0 0.0
  %722 = vmatprep.subr.mxu0 0.0
  %723 = vmatpush1.msra.mxu0 0.0
  %724 = vmatprep.subr.mxu0 0.0
  %725 = vmatpush1.msra.mxu0 0.0
  %726 = vmatprep.subr.mxu0 0.0
  %727 = vmatpush1.msra.mxu0 0.0
  %728 = vmatprep.subr.mxu0 0.0
  %729 = vmatpush1.msra.mxu0 0.0
  %730 = vmatprep.subr.mxu0 0.0
  %731 = vmatpush1.msra.mxu0 0.0
  %732 = vmatprep.subr.mxu0 0.0
  %733 = vmatpush1.msra.mxu0 0.0
  %734 = vmatprep.subr.mxu0 0.0
  %735 = vmatpush1.msra.mxu0 0.0
  %736 = vmatprep.subr.mxu0 0.0
  %737 = vmatpush1.msra.mxu0 0.0
  %738 = vmatprep.subr.mxu0 0.0
  %739 = vmatpush1.msra.mxu0 %v694
  %740 = vmatprep.subr.mxu0 0.0
  %741 = vmatpush1.msra.mxu0 %v693
  %742 = vmatprep.subr.mxu0 0.0
  %743 = vmatpush1.msra.mxu0 %v692
  %744 = vmatprep.subr.mxu0 0.0
  %745 = vmatpush1.msra.mxu0 %v691
  %746 = vmatprep.subr.mxu0 0.0
  %747 = vmatpush2.msra.mxu0 0.0
  %748 = vmatprep.subr.mxu0 0.0
  %749 = vmatpush2.msra.mxu0 0.0
  %750 = vmatprep.subr.mxu0 0.0
  %751 = vmatpush2.msra.mxu0 0.0
  %752 = vmatprep.subr.mxu0 0.0
  %753 = vmatpush2.msra.mxu0 0.0
  %754 = vmatprep.subr.mxu0 0.0
  %755 = vmatpush2.msra.mxu0 0.0
  %756 = vmatprep.subr.mxu0 0.0
  %757 = vmatpush2.msra.mxu0 0.0
  %758 = vmatprep.subr.mxu0 0.0
  %759 = vmatpush2.msra.mxu0 0.0
  %760 = vmatprep.subr.mxu0 0.0
  %761 = vmatpush2.msra.mxu0 0.0
  %762 = vmatprep.subr.mxu0 0.0
  %763 = vmatpush2.msra.mxu0 0.0
  %764 = vmatprep.subr.mxu0 0.0
  %765 = vmatpush2.msra.mxu0 0.0
  %766 = vmatprep.subr.mxu0 0.0
  %767 = vmatpush2.msra.mxu0 0.0
  %768 = vmatprep.subr.mxu0 0.0
  %769 = vmatpush2.msra.mxu0 0.0
  %770 = vmatprep.subr.mxu0 0.0
  %771 = vmatpush2.msra.mxu0 0.0
  %772 = vmatprep.subr.mxu0 0.0
  %773 = vmatpush2.msra.mxu0 0.0
  %774 = vmatprep.subr.mxu0 0.0
  %775 = vmatpush2.msra.mxu0 0.0
  %776 = vmatprep.subr.mxu0 0.0
  %777 = vmatpush2.msra.mxu0 0.0
  %778 = vmatprep.mubr.f32.mxu0 0.0
  %779 = vmatmul.mubr.f32.gmra.mxu0 %v703
  %v780 = vpop.f32.mrf.mxu0
  %v781 = vadd.f32 %v700, %v780
  %v782 = vpop.f32.mrf.mxu0
  %783 = vmatprep.mubr.f32.mxu0 0.0
  %784 = vmatmul.mubr.f32.gmra.mxu0 %v706
  %v785 = vpop.f32.mrf.mxu0
  %v786 = vadd.f32 %v700, %v785
  %v787 = vpop.f32.mrf.mxu0
  %788 = vmatprep.mubr.f32.mxu0 0.0
  %789 = vmatmul.mubr.f32.gmra.mxu0 %v709
  %v790 = vpop.f32.mrf.mxu0
  %v791 = vadd.f32 %v700, %v790
  %v792 = vpop.f32.mrf.mxu0
  %793 = vmatprep.mubr.f32.mxu0 0.0
  %794 = vmatmul.mubr.f32.gmra.mxu0 %v712
  %v795 = vpop.f32.mrf.mxu0
  %v796 = vadd.f32 %v700, %v795
  %v797 = vpop.f32.mrf.mxu0
  %798 = vdwg.mxu0
  %799 = vst [vmem:[%s10] sm:$0xff] %v781
  %800 = vst [vmem:[%s10 + $0x8] sm:$0xff] %v786
  %801 = vst [vmem:[%s10 + $0x10] sm:$0xff] %v791
  %802 = vst [vmem:[%s10 + $0x18] sm:$0xff] %v796
  // Predicated region
  $region42: #{lstm_net_forward.1} parent=0 // pred_check
    _
  $region43: #{lstm_net_forward.1} parent=0 // pred_check_branch
    %804 = sbr.rel (0) target = $region45
  $region44: #{lstm_net_forward.1} parent=0 // pred_region
    _
  $region45: #{lstm_net_forward.1} parent=0 // pred_fallthru
    _
  // Predicated region
  $region46: #{lstm_net_forward.1} parent=0 // pred_check
    _
  $region47: #{lstm_net_forward.1} parent=0 // pred_check_branch
    %806 = sbr.rel (0) target = $region49
  $region48: #{lstm_net_forward.1} parent=0 // pred_region
    _
  $region49: #{lstm_net_forward.1} parent=0 // pred_fallthru
    _
  // Predicated region
  $region50: #{lstm_net_forward.1} parent=0 // pred_check
    _
  $region51: #{lstm_net_forward.1} parent=0 // pred_check_branch
    %808 = sbr.rel (0) target = $region53
  $region52: #{lstm_net_forward.1} parent=0 // pred_region
    _
  $region53: #{lstm_net_forward.1} parent=0 // pred_fallthru
    _
  // Predicated region
  $region54: #{lstm_net_forward.1} parent=0 // pred_check
    _
  $region55: #{lstm_net_forward.1} parent=0 // pred_check_branch
    %810 = sbr.rel (0) target = $region57
  $region56: #{lstm_net_forward.1} parent=0 // pred_region
    _
  $region57: #{lstm_net_forward.1} parent=0 // pred_fallthru
    _
  // Predicated region
  $region58: #{lstm_net_forward.1} parent=0 // pred_check
    _
  $region59: #{lstm_net_forward.1} parent=0 // pred_check_branch
    %812 = sbr.rel (0) target = $region61
  $region60: #{lstm_net_forward.1} parent=0 // pred_region
    _
  $region61: #{lstm_net_forward.1} parent=0 // pred_fallthru
    _
  // Predicated region
  $region62: #{lstm_net_forward.1} parent=0 // pred_check
    _
  $region63: #{lstm_net_forward.1} parent=0 // pred_check_branch
    %814 = sbr.rel (0) target = $region65
  $region64: #{lstm_net_forward.1} parent=0 // pred_region
    _
  $region65: #{lstm_net_forward.1} parent=0 // pred_fallthru
    _

</llo_original>
